<compile_context>
chip_gen: v7x
topology: tpu7x:2x2x1
jax: 0.10.0
libtpu: 0.0.40
codegen_flags: <defaults>
</compile_context>

<pallas_src>
import functools
import math

import jax
import jax.numpy as jnp
from jax.experimental import pallas as pl
from jax.experimental.pallas import tpu as pltpu

_LANE = 128
_SUBLANE = 8


def _round_up(v, m):
    return ((v + m - 1) // m) * m


def _fused_gcn_kernel(*refs, n_layers, reassoc_last, tm):
    """refs = (x, adj, w_1..w_L, b_1..b_L, out, h_scratch).

    Grid axis 0 = output row tiles. At i == 0 all hidden layers are computed
    once and the last-layer left operand is stored in VMEM scratch; every grid
    step then emits one lane-dense (tm, Fout) output tile.
    """
    x_ref, adj_ref = refs[0], refs[1]
    w_refs = refs[2:2 + n_layers]
    b_refs = refs[2 + n_layers:2 + 2 * n_layers]
    out_ref = refs[2 + 2 * n_layers]
    h_ref = refs[3 + 2 * n_layers]

    i = pl.program_id(0)

    @pl.when(i == 0)
    def _build_last_layer_operand():
        h = x_ref[...]
        for l in range(n_layers - 1):
            # support = h @ W_l ; h = relu(adj @ support + b_l)
            s = jnp.dot(h, w_refs[l][...], preferred_element_type=jnp.float32)
            h = jnp.dot(adj_ref[...], s, preferred_element_type=jnp.float32)
            h = jnp.maximum(h + b_refs[l][...], 0.0)  # relu fused on the write
            # TODO(synk): training-mode dropout (pltpu.prng_*) not implemented;
            # identity (eval) semantics here.
        if not reassoc_last:
            # Pre-project once so the per-tile adj contraction is at Fout width.
            h = jnp.dot(h, w_refs[-1][...], preferred_element_type=jnp.float32)
        h_ref[...] = h

    # Final layer for this row tile (lane-dense output store).
    row0 = pl.multiple_of(i * tm, tm)
    a_rows = adj_ref[pl.ds(row0, tm), :]                                  # (tm, N_pad)
    agg = jnp.dot(a_rows, h_ref[...], preferred_element_type=jnp.float32)
    if reassoc_last:
        # (adj @ h) @ W : N^2 contraction at the narrower hidden width.
        agg = jnp.dot(agg, w_refs[-1][...], preferred_element_type=jnp.float32)
    out_ref[...] = (agg + b_refs[-1][...]).astype(out_ref.dtype)


def gcn_forward(x, adj, params, layer_num=2, row_tile=None):
    """GCN.forward with `layer_num` GraphConvolution layers (dropout = identity)."""
    assert 1 <= layer_num <= len(params)
    N, f_in = x.shape
    ws = [jnp.asarray(w, jnp.float32) for (w, _) in params[:layer_num]]
    bs = [jnp.asarray(b, jnp.float32) for (_, b) in params[:layer_num]]
    f_out = ws[-1].shape[1]

    # Row tile over output rows.
    if row_tile is None:
        row_tile = 256 if N > 256 else _round_up(N, _SUBLANE)
    tm = _round_up(row_tile, _SUBLANE)
    n_pad = _round_up(N, tm)
    n_tiles = n_pad // tm

    # Zero-pad feature dims to full 128-lane vregs (exact: padded adj rows/cols
    # and x columns are zero; padded output rows/cols sliced off at the end).
    f_in_p = _round_up(f_in, _LANE)
    f_out_p = _round_up(f_out, _LANE)
    pad_w, pad_b = [], []
    for w, b in zip(ws, bs):
        di = _round_up(w.shape[0], _LANE)
        do = _round_up(w.shape[1], _LANE)
        pad_w.append(jnp.zeros((di, do), jnp.float32).at[:w.shape[0], :w.shape[1]].set(w))
        pad_b.append(jnp.zeros((1, do), jnp.float32).at[0, :b.shape[0]].set(b))

    x_p = jnp.zeros((n_pad, f_in_p), jnp.float32).at[:N, :f_in].set(x)
    adj_p = jnp.zeros((n_pad, n_pad), jnp.float32).at[:N, :N].set(adj)

    # Width of the last-layer left operand kept resident in VMEM scratch.
    k_last_p = pad_w[-1].shape[0]            # hidden_pad (or f_in_pad when L == 1)
    reassoc_last = k_last_p < f_out_p        # contract adj at the narrower width
    scratch_w = k_last_p if reassoc_last else f_out_p

    # TODO(synk): optional bf16 MXU inputs (f32 accumulation) for v5e/v6e; kept
    # f32 here to match torch.mm numerics.

    def full_spec(arr):
        return pl.BlockSpec(arr.shape, lambda i: (0, 0))

    in_specs = ([full_spec(x_p), full_spec(adj_p)]
                + [full_spec(w) for w in pad_w]
                + [full_spec(b) for b in pad_b])

    # Rough VMEM budget: resident inputs + scratch + double-buffered output tile.
    n_words = (x_p.size + adj_p.size + sum(w.size for w in pad_w)
               + sum(b.size for b in pad_b) + n_pad * scratch_w
               + 2 * tm * f_out_p)
    vmem_limit = int(min(max(2 * 4 * n_words, 32 * 2 ** 20), 56 * 2 ** 20))

    kernel = functools.partial(
        _fused_gcn_kernel, n_layers=layer_num, reassoc_last=reassoc_last, tm=tm)

    out_p = pl.pallas_call(
        kernel,
        out_shape=jax.ShapeDtypeStruct((n_pad, f_out_p), jnp.float32),
        grid_spec=pltpu.PrefetchScalarGridSpec(
            num_scalar_prefetch=0,
            grid=(n_tiles,),
            in_specs=in_specs,
            out_specs=pl.BlockSpec((tm, f_out_p), lambda i: (i, 0)),
            scratch_shapes=[pltpu.VMEM((n_pad, scratch_w), jnp.float32)],
        ),
        compiler_params=pltpu.CompilerParams(
            # "arbitrary": scratch built at i == 0 is consumed by all row tiles,
            # so the row axis cannot be megacore-split.
            dimension_semantics=("arbitrary",),
            vmem_limit_bytes=vmem_limit,
        ),
    )(x_p, adj_p, *pad_w, *pad_b)

    return out_p[:N, :f_out]


def init_graph_conv_params(key, in_features, out_features):
    """Matches PyTorch reset_parameters: uniform(-stdv, stdv), stdv = 1/sqrt(out)."""
    stdv = 1.0 / math.sqrt(out_features)
    kw, kb = jax.random.split(key)
    w = jax.random.uniform(kw, (in_features, out_features),
                           minval=-stdv, maxval=stdv, dtype=jnp.float32)
    b = jax.random.uniform(kb, (out_features,),
                           minval=-stdv, maxval=stdv, dtype=jnp.float32)
    return w, b


if __name__ == "__main__":
    key = jax.random.PRNGKey(0)
    k_x, k_adj, k_p1, k_p2 = jax.random.split(key, 4)

    # Small shapes consistent with the module: N nodes, in_feature, hidden, out.
    N = 32
    in_feature = 32
    hidden_size = 32
    out_feature = 256
    layer_num = 2

    # Deterministic inputs.
    x = jax.random.normal(k_x, (N, in_feature), dtype=jnp.float32)
    # Symmetric row-normalized adjacency with self-loops.
    a = (jax.random.uniform(k_adj, (N, N)) > 0.5).astype(jnp.float32)
    a = jnp.maximum(a, a.T) + jnp.eye(N, dtype=jnp.float32)
    adj = a / jnp.sum(a, axis=1, keepdims=True)

    # Deterministic parameters (gc1: in->hidden, gc2: hidden->out).
    params = [
        init_graph_conv_params(k_p1, in_feature, hidden_size),
        init_graph_conv_params(k_p2, hidden_size, out_feature),
    ]

    # row_tile=8 so the demo exercises multiple grid steps (4 row tiles).
    out = gcn_forward(x, adj, params, layer_num=layer_num, row_tile=8)
    out = jax.block_until_ready(out)

    # Pure-JAX reference of the fused computation (torch.mm convention).
    (w1, b1), (w2, b2) = params
    h_ref = adj @ (x @ w1) + b1
    h_ref = adj @ (jnp.maximum(h_ref, 0.0) @ w2) + b2

    assert out.shape == (N, out_feature)
    assert jnp.allclose(out, h_ref, atol=1e-4, rtol=1e-4), \
        float(jnp.max(jnp.abs(out - h_ref)))

    print("KERNEL_OK")
</pallas_src>

<mosaic_0001>
module attributes {stable_mosaic.version = 11 : i64} {
  func.func @_fused_gcn_kernel(%arg0: i32, %arg1: memref<32x128xf32, #tpu.memory_space<vmem>>, %arg2: memref<32x32xf32, #tpu.memory_space<vmem>>, %arg3: memref<128x128xf32, #tpu.memory_space<vmem>>, %arg4: memref<128x256xf32, #tpu.memory_space<vmem>>, %arg5: memref<1x128xf32, #tpu.memory_space<vmem>>, %arg6: memref<1x256xf32, #tpu.memory_space<vmem>>, %arg7: memref<8x256xf32, #tpu.memory_space<vmem>>, %arg8: memref<32x128xf32, #tpu.memory_space<vmem>>) attributes {dimension_semantics = [#tpu.dimension_semantics<arbitrary>], iteration_bounds = array<i64: 4>, scalar_prefetch = 0 : i64, scratch_operands = 1 : i64, tpu.core_type = #tpu.core_type<tc>, window_params = [{pipeline_mode = #tpu.pipeline_mode<synchronous>, transform_indices = @transform_0, window_bounds = array<i64: 32, 128>}, {pipeline_mode = #tpu.pipeline_mode<synchronous>, transform_indices = @transform_1, window_bounds = array<i64: 32, 32>}, {pipeline_mode = #tpu.pipeline_mode<synchronous>, transform_indices = @transform_2, window_bounds = array<i64: 128, 128>}, {pipeline_mode = #tpu.pipeline_mode<synchronous>, transform_indices = @transform_3, window_bounds = array<i64: 128, 256>}, {pipeline_mode = #tpu.pipeline_mode<synchronous>, transform_indices = @transform_4, window_bounds = array<i64: 1, 128>}, {pipeline_mode = #tpu.pipeline_mode<synchronous>, transform_indices = @transform_5, window_bounds = array<i64: 1, 256>}, {transform_indices = @transform_6, window_bounds = array<i64: 8, 256>}]} {
    %c0_i32 = arith.constant 0 : i32
    %0 = arith.cmpi eq, %arg0, %c0_i32 : i32
    %1 = arith.extui %0 : i1 to i32
    %c0_i32_0 = arith.constant 0 : i32
    %2 = arith.cmpi ne, %1, %c0_i32_0 : i32
    scf.if %2 {
      %c0_10 = arith.constant 0 : index
      %c0_11 = arith.constant 0 : index
      %15 = vector.load %arg1[%c0_10, %c0_11] : memref<32x128xf32, #tpu.memory_space<vmem>>, vector<32x128xf32>
      %c0_12 = arith.constant 0 : index
      %c0_13 = arith.constant 0 : index
      %16 = vector.load %arg3[%c0_12, %c0_13] : memref<128x128xf32, #tpu.memory_space<vmem>>, vector<128x128xf32>
      %cst_14 = arith.constant dense<0.000000e+00> : vector<32x128xf32>
      %17 = tpu.matmul %15, %16, %cst_14 {dimension_numbers = #tpu.dot_dimension_numbers<[1], [0], [0], [1], [0, 0, 1, 1], [], []>} : vector<32x128xf32>, vector<128x128xf32>, vector<32x128xf32> -> vector<32x128xf32>
      %c0_15 = arith.constant 0 : index
      %c0_16 = arith.constant 0 : index
      %18 = vector.load %arg2[%c0_15, %c0_16] : memref<32x32xf32, #tpu.memory_space<vmem>>, vector<32x32xf32>
      %cst_17 = arith.constant dense<0.000000e+00> : vector<32x128xf32>
      %19 = tpu.matmul %18, %17, %cst_17 {dimension_numbers = #tpu.dot_dimension_numbers<[1], [0], [0], [1], [0, 0, 1, 1], [], []>} : vector<32x32xf32>, vector<32x128xf32>, vector<32x128xf32> -> vector<32x128xf32>
      %c0_18 = arith.constant 0 : index
      %c0_19 = arith.constant 0 : index
      %20 = vector.load %arg5[%c0_18, %c0_19] : memref<1x128xf32, #tpu.memory_space<vmem>>, vector<1x128xf32>
      %21 = vector.broadcast %20 : vector<1x128xf32> to vector<32x128xf32>
      %22 = arith.addf %19, %21 : vector<32x128xf32>
      %cst_20 = arith.constant 0.000000e+00 : f32
      %23 = vector.broadcast %cst_20 : f32 to vector<32x128xf32>
      %24 = arith.maximumf %22, %23 : vector<32x128xf32>
      %c0_21 = arith.constant 0 : index
      %c0_22 = arith.constant 0 : index
      %25 = vector.load %arg8[%c0_21, %c0_22] : memref<32x128xf32, #tpu.memory_space<vmem>>, vector<32x128xf32>
      tpu.vector_store %arg8[%c0_21, %c0_22], %24 {strides = array<i32>} : memref<32x128xf32, #tpu.memory_space<vmem>>, vector<32x128xf32>,
    } else {
    }
    %c8_i32 = arith.constant 8 : i32
    %3 = arith.muli %arg0, %c8_i32 : i32
    %4 = tpu.assume_multiple %3, 8 : i32
    %5 = arith.index_cast %4 : i32 to index
    %c0 = arith.constant 0 : index
    %6 = vector.load %arg2[%5, %c0] : memref<32x32xf32, #tpu.memory_space<vmem>>, vector<8x32xf32>
    %c0_1 = arith.constant 0 : index
    %c0_2 = arith.constant 0 : index
    %7 = vector.load %arg8[%c0_1, %c0_2] : memref<32x128xf32, #tpu.memory_space<vmem>>, vector<32x128xf32>
    %cst = arith.constant dense<0.000000e+00> : vector<8x128xf32>
    %8 = tpu.matmul %6, %7, %cst {dimension_numbers = #tpu.dot_dimension_numbers<[1], [0], [0], [1], [0, 0, 1, 1], [], []>} : vector<8x32xf32>, vector<32x128xf32>, vector<8x128xf32> -> vector<8x128xf32>
    %c0_3 = arith.constant 0 : index
    %c0_4 = arith.constant 0 : index
    %9 = vector.load %arg4[%c0_3, %c0_4] : memref<128x256xf32, #tpu.memory_space<vmem>>, vector<128x256xf32>
    %cst_5 = arith.constant dense<0.000000e+00> : vector<8x256xf32>
    %10 = tpu.matmul %8, %9, %cst_5 {dimension_numbers = #tpu.dot_dimension_numbers<[1], [0], [0], [1], [0, 0, 1, 1], [], []>} : vector<8x128xf32>, vector<128x256xf32>, vector<8x256xf32> -> vector<8x256xf32>
    %c0_6 = arith.constant 0 : index
    %c0_7 = arith.constant 0 : index
    %11 = vector.load %arg6[%c0_6, %c0_7] : memref<1x256xf32, #tpu.memory_space<vmem>>, vector<1x256xf32>
    %12 = vector.broadcast %11 : vector<1x256xf32> to vector<8x256xf32>
    %13 = arith.addf %10, %12 : vector<8x256xf32>
    %c0_8 = arith.constant 0 : index
    %c0_9 = arith.constant 0 : index
    %14 = vector.load %arg7[%c0_8, %c0_9] : memref<8x256xf32, #tpu.memory_space<vmem>>, vector<8x256xf32>
    tpu.vector_store %arg7[%c0_8, %c0_9], %13 {strides = array<i32>} : memref<8x256xf32, #tpu.memory_space<vmem>>, vector<8x256xf32>,
    return
  }
  func.func @transform_0(%arg0: i32) -> (i32, i32) {
    %c0_i32 = arith.constant 0 : i32
    %c0_i32_0 = arith.constant 0 : i32
    %c0_i32_1 = arith.constant 0 : i32
    return %c0_i32, %c0_i32_0 : i32, i32
  }
  func.func @transform_1(%arg0: i32) -> (i32, i32) {
    %c0_i32 = arith.constant 0 : i32
    %c0_i32_0 = arith.constant 0 : i32
    %c0_i32_1 = arith.constant 0 : i32
    return %c0_i32, %c0_i32_0 : i32, i32
  }
  func.func @transform_2(%arg0: i32) -> (i32, i32) {
    %c0_i32 = arith.constant 0 : i32
    %c0_i32_0 = arith.constant 0 : i32
    %c0_i32_1 = arith.constant 0 : i32
    return %c0_i32, %c0_i32_0 : i32, i32
  }
  func.func @transform_3(%arg0: i32) -> (i32, i32) {
    %c0_i32 = arith.constant 0 : i32
    %c0_i32_0 = arith.constant 0 : i32
    %c0_i32_1 = arith.constant 0 : i32
    return %c0_i32, %c0_i32_0 : i32, i32
  }
  func.func @transform_4(%arg0: i32) -> (i32, i32) {
    %c0_i32 = arith.constant 0 : i32
    %c0_i32_0 = arith.constant 0 : i32
    %c0_i32_1 = arith.constant 0 : i32
    return %c0_i32, %c0_i32_0 : i32, i32
  }
  func.func @transform_5(%arg0: i32) -> (i32, i32) {
    %c0_i32 = arith.constant 0 : i32
    %c0_i32_0 = arith.constant 0 : i32
    %c0_i32_1 = arith.constant 0 : i32
    return %c0_i32, %c0_i32_0 : i32, i32
  }
  func.func @transform_6(%arg0: i32) -> (i32, i32) {
    %c0_i32 = arith.constant 0 : i32
    %c0_i32_0 = arith.constant 0 : i32
    return %arg0, %c0_i32 : i32, i32
  }
}

</mosaic_0001>

<llo_original>
// kernel: tpu_custom_call.1
$region0: #{tpu_custom_call.1}
  #allocation0 [shape = 'u32[]', space=smem, size = 0x4, offset = 0x4, fixed_abs, tag = 'smem constant byte address 0x4 - core index']
  #allocation1 [shape = 'u32[144,128]{1,0:T(1,128)}', space=vmem, size = 0x12000, scoped, tag = 'internal scratch']
  #allocation2 [shape = 'f32[32,128]{1,0:T(8,128)}', space=vmem, size = 0x4000, scoped, tag = 'scratch operand']
  %s0 = inlined_call_operand.hbm [shape: f32[32,128], index: 0, kind: input, shape index: {}]
  %s1 = inlined_call_operand.hbm [shape: f32[32,32], index: 1, kind: input, shape index: {}]
  %s2 = inlined_call_operand.hbm [shape: f32[128,128], index: 2, kind: input, shape index: {}]
  %s3 = inlined_call_operand.hbm [shape: f32[128,256], index: 3, kind: input, shape index: {}]
  %s4 = inlined_call_operand.vmem [shape: f32[1,128], index: 4, kind: input, shape index: {}]
  %s5 = inlined_call_operand.vmem [shape: f32[1,256], index: 5, kind: input, shape index: {}]
  %s6 = inlined_call_operand.hbm [shape: f32[32,256], index: 6, kind: output, shape index: {}]
  %s7 = sld [smem:[#allocation0]]
  $region77: #{tpu_custom_call.1} parent=0
    _
  %s9 = ssub.s32 1, %s7
  %s10 = scalar_select 0, %s9, %s7
  $region1: #{tpu_custom_call.1} parent=0
    #allocation3 [shape = 'u8[16384]{0}', space=vmem, size = 0x4000, scoped, tag = 'input window, operand 0, single buffered']
    #allocation4 [shape = 's32[2]{0}', space=sflag, size = 0x8, scoped, tag = 'scoped memory for tpu_custom_call.1']
    #allocation5 [shape = 's32[2]{0}', space=sflag, size = 0x8, scoped, tag = 'scoped memory for tpu_custom_call.1']
    #allocation6 [shape = 'u8[16384]{0}', space=vmem, size = 0x4000, scoped, tag = 'input window, operand 1, single buffered']
    #allocation7 [shape = 's32[1]{0}', space=sflag, size = 0x4, scoped, tag = 'scoped memory for tpu_custom_call.1']
    #allocation8 [shape = 'u8[65536]{0}', space=vmem, size = 0x10000, scoped, tag = 'input window, operand 2, single buffered']
    #allocation9 [shape = 'u8[131072]{0}', space=vmem, size = 0x20000, scoped, tag = 'input window, operand 3, single buffered']
    #allocation10 [shape = 's32[1]{0}', space=sflag, size = 0x4, scoped, tag = 'scoped memory for tpu_custom_call.1']
    #allocation11 [shape = 'u8[16384]{0}', space=vmem, size = 0x4000, scoped, tag = 'output window, operand 0']
    %11 = vsyncpa [#allocation4], 0
    %12 = vsyncpa [#allocation7], 0
    %13 = vsyncpa [#allocation10], 0
    %14 = vsyncpa [#allocation5], 0
    %s15 = scalar_lea.sflag [#allocation5], 1
    %16 = vsyncpa %s15, 0
    loop: start=0, step=1, limit=6
    $region2: #{tpu_custom_call.1} parent=1 // loop_pre_header
      _
    $region3: #{tpu_custom_call.1} parent=1 // loop_header
      %s18 = sphi 0, %s22
      %p19 = scmp.ge.s32.totalorder %s18, 6
      %s26 = sphi 0, %s26
      %s28 = sphi 0, %s26
      %s29 = sphi 0, %s28
      %s43 = sphi 0, %s29
      %s47 = sphi 0, %s47
      %s49 = sphi 0, %s47
      %s50 = sphi 0, %s49
      %s64 = sphi 0, %s50
      %s68 = sphi 0, %s68
      %s70 = sphi 0, %s68
      %s71 = sphi 0, %s70
      %s85 = sphi 0, %s71
      %s89 = sphi 0, %s89
      %s91 = sphi 0, %s89
      %s92 = sphi 0, %s91
      %s106 = sphi 0, %s92
      %s110 = sphi 0, %s110
      %s112 = sphi 0, %s110
      %s113 = sphi 0, %s112
      %s127 = sphi 0, %s113
      %s131 = sphi 0, %s131
      %s133 = sphi 0, %s131
      %s134 = sphi 0, %s133
      %s148 = sphi 0, %s134
      %s154 = sphi 0, %s156
      %s157 = sphi 0, %s154
      %s158 = sphi 0, %s157
      %s174 = sphi 0, %s158
    $region4: #{tpu_custom_call.1} parent=1 // loop_header_branch
      %21 = sbr.rel (%p19) target = $region8
    $region5: #{tpu_custom_call.1} parent=1 // loop_body
      %s23 = ssub.s32 %s18, 1
      %s24 = ssub.s32 %s18, 2
      %s25 = sadd.s32 %s18, 1
      %s27 = sadd.s32 %s26, 1
      %p30 = scmp.eq.s32.totalorder %s18, 3
      %p31 = scmp.ne.s32.totalorder %s26, %s28
      %p32 = scmp.eq.s32.totalorder %s18, 0
      %p33 = por %p31, %p32
      %p34 = scmp.ne.s32.totalorder %s26, %s28
      %p35 = scmp.eq.s32.totalorder %s23, 3
      %p36 = por %p34, %p35
      %p37 = scmp.ne.s32.totalorder %s28, %s29
      %p38 = scmp.eq.s32.totalorder %s23, 0
      %p39 = por %p37, %p38
      %p40 = scmp.ne.s32.totalorder %s28, %s29
      %p41 = scmp.eq.s32.totalorder %s24, 3
      %p42 = por %p40, %p41
      %p44 = scmp.ne.s32.totalorder %s29, %s43
      %p45 = scmp.eq.s32.totalorder %s24, 0
      %p46 = por %p44, %p45
      %s48 = sadd.s32 %s47, 1
      %p51 = scmp.eq.s32.totalorder %s18, 3
      %p52 = scmp.ne.s32.totalorder %s47, %s49
      %p53 = scmp.eq.s32.totalorder %s18, 0
      %p54 = por %p52, %p53
      %p55 = scmp.ne.s32.totalorder %s47, %s49
      %p56 = scmp.eq.s32.totalorder %s23, 3
      %p57 = por %p55, %p56
      %p58 = scmp.ne.s32.totalorder %s49, %s50
      %p59 = scmp.eq.s32.totalorder %s23, 0
      %p60 = por %p58, %p59
      %p61 = scmp.ne.s32.totalorder %s49, %s50
      %p62 = scmp.eq.s32.totalorder %s24, 3
      %p63 = por %p61, %p62
      %p65 = scmp.ne.s32.totalorder %s50, %s64
      %p66 = scmp.eq.s32.totalorder %s24, 0
      %p67 = por %p65, %p66
      %s69 = sadd.s32 %s68, 1
      %p72 = scmp.eq.s32.totalorder %s18, 3
      %p73 = scmp.ne.s32.totalorder %s68, %s70
      %p74 = scmp.eq.s32.totalorder %s18, 0
      %p75 = por %p73, %p74
      %p76 = scmp.ne.s32.totalorder %s68, %s70
      %p77 = scmp.eq.s32.totalorder %s23, 3
      %p78 = por %p76, %p77
      %p79 = scmp.ne.s32.totalorder %s70, %s71
      %p80 = scmp.eq.s32.totalorder %s23, 0
      %p81 = por %p79, %p80
      %p82 = scmp.ne.s32.totalorder %s70, %s71
      %p83 = scmp.eq.s32.totalorder %s24, 3
      %p84 = por %p82, %p83
      %p86 = scmp.ne.s32.totalorder %s71, %s85
      %p87 = scmp.eq.s32.totalorder %s24, 0
      %p88 = por %p86, %p87
      %s90 = sadd.s32 %s89, 1
      %p93 = scmp.eq.s32.totalorder %s18, 3
      %p94 = scmp.ne.s32.totalorder %s89, %s91
      %p95 = scmp.eq.s32.totalorder %s18, 0
      %p96 = por %p94, %p95
      %p97 = scmp.ne.s32.totalorder %s89, %s91
      %p98 = scmp.eq.s32.totalorder %s23, 3
      %p99 = por %p97, %p98
      %p100 = scmp.ne.s32.totalorder %s91, %s92
      %p101 = scmp.eq.s32.totalorder %s23, 0
      %p102 = por %p100, %p101
      %p103 = scmp.ne.s32.totalorder %s91, %s92
      %p104 = scmp.eq.s32.totalorder %s24, 3
      %p105 = por %p103, %p104
      %p107 = scmp.ne.s32.totalorder %s92, %s106
      %p108 = scmp.eq.s32.totalorder %s24, 0
      %p109 = por %p107, %p108
      %s111 = sadd.s32 %s110, 1
      %p114 = scmp.eq.s32.totalorder %s18, 3
      %p115 = scmp.ne.s32.totalorder %s110, %s112
      %p116 = scmp.eq.s32.totalorder %s18, 0
      %p117 = por %p115, %p116
      %p118 = scmp.ne.s32.totalorder %s110, %s112
      %p119 = scmp.eq.s32.totalorder %s23, 3
      %p120 = por %p118, %p119
      %p121 = scmp.ne.s32.totalorder %s112, %s113
      %p122 = scmp.eq.s32.totalorder %s23, 0
      %p123 = por %p121, %p122
      %p124 = scmp.ne.s32.totalorder %s112, %s113
      %p125 = scmp.eq.s32.totalorder %s24, 3
      %p126 = por %p124, %p125
      %p128 = scmp.ne.s32.totalorder %s113, %s127
      %p129 = scmp.eq.s32.totalorder %s24, 0
      %p130 = por %p128, %p129
      %s132 = sadd.s32 %s131, 1
      %p135 = scmp.eq.s32.totalorder %s18, 3
      %p136 = scmp.ne.s32.totalorder %s131, %s133
      %p137 = scmp.eq.s32.totalorder %s18, 0
      %p138 = por %p136, %p137
      %p139 = scmp.ne.s32.totalorder %s131, %s133
      %p140 = scmp.eq.s32.totalorder %s23, 3
      %p141 = por %p139, %p140
      %p142 = scmp.ne.s32.totalorder %s133, %s134
      %p143 = scmp.eq.s32.totalorder %s23, 0
      %p144 = por %p142, %p143
      %p145 = scmp.ne.s32.totalorder %s133, %s134
      %p146 = scmp.eq.s32.totalorder %s24, 3
      %p147 = por %p145, %p146
      %p149 = scmp.ne.s32.totalorder %s134, %s148
      %p150 = scmp.eq.s32.totalorder %s24, 0
      %p151 = por %p149, %p150
      %s152 = ssub.s32 %s18, %s25
      %p153 = scmp.eq.s32.totalorder %s152, 0
      %s155 = sadd.s32 %s154, 1
      %s156 = scalar_select %p153, %s154, %s155
      %p159 = pneg %p153
      %p160 = scmp.eq.s32.totalorder %s18, 3
      %p161 = por %p159, %p160
      %p162 = scmp.ne.s32.totalorder %s154, %s157
      %p163 = scmp.eq.s32.totalorder %s18, 0
      %p164 = por %p162, %p163
      %p165 = scmp.ne.s32.totalorder %s154, %s157
      %p166 = scmp.eq.s32.totalorder %s23, 3
      %p167 = por %p165, %p166
      %p168 = scmp.ne.s32.totalorder %s157, %s158
      %p169 = scmp.eq.s32.totalorder %s23, 0
      %p170 = por %p168, %p169
      %p171 = scmp.ne.s32.totalorder %s157, %s158
      %p172 = scmp.eq.s32.totalorder %s24, 3
      %p173 = por %p171, %p172
      %p175 = scmp.ne.s32.totalorder %s158, %s174
      %p176 = scmp.eq.s32.totalorder %s24, 0
      %p177 = por %p175, %p176
      %p178 = scmp.le.s32.totalorder 1, %s18
      %p179 = scmp.lt.s32.totalorder %s18, 5
      %p180 = pnand %p178, %p179
      %p181 = pneg %p180
      // Predicated region
      $region9: #{tpu_custom_call.1} parent=5 // pred_check
        _
      $region10: #{tpu_custom_call.1} parent=5 // pred_check_branch
        %183 = sbr.rel (%p180) target = $region12
      $region11: #{tpu_custom_call.1} parent=5 // pred_region
        %s184 = ssub.s32 %s18, 1
        // Predicated region
        $region13: #{tpu_custom_call.1} parent=11 // pred_check
          %p185 = pneg %p39
        $region14: #{tpu_custom_call.1} parent=11 // pred_check_branch
          %187 = sbr.rel (%p185) target = $region16
        $region15: #{tpu_custom_call.1} parent=11 // pred_region
          %s189 = ssub.s32 512, 512
          %190 = vsyncadd [#allocation4], %s189
          %s191 = sshll.u32 [#allocation3], 4
          %s192 = int_to_ptr.vmem [resolvable:$true] %s191
          %197 = dma.hbm_to_vmem [thread:$0]  %s0, 512, %s192, [#allocation4], 128, 128, 8
        $region16: #{tpu_custom_call.1} parent=11 // pred_fallthru
          _
        // Predicated region
        $region17: #{tpu_custom_call.1} parent=11 // pred_check
          %p198 = pneg %p60
        $region18: #{tpu_custom_call.1} parent=11 // pred_check_branch
          %200 = sbr.rel (%p198) target = $region20
        $region19: #{tpu_custom_call.1} parent=11 // pred_region
          %s202 = ssub.s32 512, 512
          %203 = vsyncadd [#allocation7], %s202
          %s204 = sshll.u32 [#allocation6], 4
          %s205 = int_to_ptr.vmem [resolvable:$true] %s204
          %210 = dma.hbm_to_vmem [thread:$0]  %s1, 512, %s205, [#allocation7], 128, 128, 8
        $region20: #{tpu_custom_call.1} parent=11 // pred_fallthru
          _
        // Predicated region
        $region21: #{tpu_custom_call.1} parent=11 // pred_check
          %p211 = pneg %p81
        $region22: #{tpu_custom_call.1} parent=11 // pred_check_branch
          %213 = sbr.rel (%p211) target = $region24
        $region23: #{tpu_custom_call.1} parent=11 // pred_region
          %s215 = ssub.s32 2048, 2048
          %216 = vsyncadd [#allocation7], %s215
          %s217 = sshll.u32 [#allocation8], 4
          %s218 = int_to_ptr.vmem [resolvable:$true] %s217
          %223 = dma.hbm_to_vmem [thread:$0]  %s2, 2048, %s218, [#allocation7], 128, 128, 8
        $region24: #{tpu_custom_call.1} parent=11 // pred_fallthru
          _
        // Predicated region
        $region25: #{tpu_custom_call.1} parent=11 // pred_check
          %p224 = pneg %p102
        $region26: #{tpu_custom_call.1} parent=11 // pred_check_branch
          %226 = sbr.rel (%p224) target = $region28
        $region27: #{tpu_custom_call.1} parent=11 // pred_region
          %s228 = ssub.s32 4096, 4096
          %229 = vsyncadd [#allocation10], %s228
          %s230 = sshll.u32 [#allocation9], 4
          %s231 = int_to_ptr.vmem [resolvable:$true] %s230
          %236 = dma.hbm_to_vmem [thread:$0]  %s3, 4096, %s231, [#allocation10], 256, 256, 16
        $region28: #{tpu_custom_call.1} parent=11 // pred_fallthru
          _
        // Predicated region
        $region29: #{tpu_custom_call.1} parent=11 // pred_check
          %p237 = pneg %p123
        $region30: #{tpu_custom_call.1} parent=11 // pred_check_branch
          %239 = sbr.rel (%p237) target = $region32
        $region31: #{tpu_custom_call.1} parent=11 // pred_region
          _
        $region32: #{tpu_custom_call.1} parent=11 // pred_fallthru
          _
        // Predicated region
        $region33: #{tpu_custom_call.1} parent=11 // pred_check
          %p240 = pneg %p144
        $region34: #{tpu_custom_call.1} parent=11 // pred_check_branch
          %242 = sbr.rel (%p240) target = $region36
        $region35: #{tpu_custom_call.1} parent=11 // pred_region
          _
        $region36: #{tpu_custom_call.1} parent=11 // pred_fallthru
          _
      $region12: #{tpu_custom_call.1} parent=5 // pred_fallthru
        _
      %p243 = scmp.lt.s32.totalorder %s18, 4
      // Predicated region
      $region37: #{tpu_custom_call.1} parent=5 // pred_check
        %p244 = pneg %p243
      $region38: #{tpu_custom_call.1} parent=5 // pred_check_branch
        %246 = sbr.rel (%p244) target = $region40
      $region39: #{tpu_custom_call.1} parent=5 // pred_region
        _
      $region40: #{tpu_custom_call.1} parent=5 // pred_fallthru
        _
      %p247 = scmp.le.s32.totalorder 1, %s18
      %p248 = scmp.lt.s32.totalorder %s18, 5
      %p249 = pnand %p247, %p248
      %p250 = pneg %p249
      // Predicated region
      $region41: #{tpu_custom_call.1} parent=5 // pred_check
        _
      $region42: #{tpu_custom_call.1} parent=5 // pred_check_branch
        %252 = sbr.rel (%p249) target = $region44
      $region43: #{tpu_custom_call.1} parent=5 // pred_region
        %s253 = ssub.s32 %s18, 1
        // Predicated region
        $region45: #{tpu_custom_call.1} parent=43 // pred_check
          %p254 = pneg %p39
        $region46: #{tpu_custom_call.1} parent=43 // pred_check_branch
          %256 = sbr.rel (%p254) target = $region48
        $region47: #{tpu_custom_call.1} parent=43 // pred_region
          %257 = dma.done [#allocation4], 512
        $region48: #{tpu_custom_call.1} parent=43 // pred_fallthru
          _
        // Predicated region
        $region49: #{tpu_custom_call.1} parent=43 // pred_check
          %p258 = pneg %p60
        $region50: #{tpu_custom_call.1} parent=43 // pred_check_branch
          %260 = sbr.rel (%p258) target = $region52
        $region51: #{tpu_custom_call.1} parent=43 // pred_region
          %261 = dma.done [#allocation7], 512
        $region52: #{tpu_custom_call.1} parent=43 // pred_fallthru
          _
        // Predicated region
        $region53: #{tpu_custom_call.1} parent=43 // pred_check
          %p262 = pneg %p81
        $region54: #{tpu_custom_call.1} parent=43 // pred_check_branch
          %264 = sbr.rel (%p262) target = $region56
        $region55: #{tpu_custom_call.1} parent=43 // pred_region
          %265 = dma.done [#allocation7], 2048
        $region56: #{tpu_custom_call.1} parent=43 // pred_fallthru
          _
        // Predicated region
        $region57: #{tpu_custom_call.1} parent=43 // pred_check
          %p266 = pneg %p102
        $region58: #{tpu_custom_call.1} parent=43 // pred_check_branch
          %268 = sbr.rel (%p266) target = $region60
        $region59: #{tpu_custom_call.1} parent=43 // pred_region
          %269 = dma.done [#allocation10], 4096
        $region60: #{tpu_custom_call.1} parent=43 // pred_fallthru
          _
        %p270 = pneg %p39
        %p271 = pneg %p36
        %p272 = pneg %p60
        %p273 = pneg %p57
        %p274 = pneg %p81
        %p275 = pneg %p78
        %p276 = pneg %p102
        %p277 = pneg %p99
        %p278 = pneg %p123
        %p279 = pneg %p120
        %p280 = pneg %p144
        %p281 = pneg %p141
        %p282 = pneg %p170
        %p283 = pneg %p167
        %s284 = sand.u32 %s157, 1
        %s285 = scalar_lea.sflag [#allocation5], %s284
        %s286 = sand.u32 %s157, 1
        %s287 = smul.addr %s286, 16
        %s288 = scalar_lea.vmem [#allocation11], %s287
        %p289 = scmp.eq.s32.totalorder %s23, 0
        // Predicated region
        $region61: #{tpu_custom_call.1} parent=43 // pred_check
          %p290 = pneg %p289
        $region62: #{tpu_custom_call.1} parent=43 // pred_check_branch
          %292 = sbr.rel (%p290) target = $region64
        $region63: #{tpu_custom_call.1} parent=43 // pred_region
          %v293 = vld [vmem:[#allocation3] sm:$0xff]
          %v294 = vld [vmem:[#allocation3 + $0x8] sm:$0xff]
          %v295 = vld [vmem:[#allocation3 + $0x10] sm:$0xff]
          %v296 = vld [vmem:[#allocation3 + $0x18] sm:$0xff]
          %v297 = vld [vmem:[#allocation8] sm:$0xff]
          %v298 = vld [vmem:[#allocation8 + $0x8] sm:$0xff]
          %v299 = vld [vmem:[#allocation8 + $0x10] sm:$0xff]
          %v300 = vld [vmem:[#allocation8 + $0x18] sm:$0xff]
          %v301 = vld [vmem:[#allocation8 + $0x20] sm:$0xff]
          %v302 = vld [vmem:[#allocation8 + $0x28] sm:$0xff]
          %v303 = vld [vmem:[#allocation8 + $0x30] sm:$0xff]
          %v304 = vld [vmem:[#allocation8 + $0x38] sm:$0xff]
          %v305 = vld [vmem:[#allocation8 + $0x40] sm:$0xff]
          %v306 = vld [vmem:[#allocation8 + $0x48] sm:$0xff]
          %v307 = vld [vmem:[#allocation8 + $0x50] sm:$0xff]
          %v308 = vld [vmem:[#allocation8 + $0x58] sm:$0xff]
          %v309 = vld [vmem:[#allocation8 + $0x60] sm:$0xff]
          %v310 = vld [vmem:[#allocation8 + $0x68] sm:$0xff]
          %v311 = vld [vmem:[#allocation8 + $0x70] sm:$0xff]
          %v312 = vld [vmem:[#allocation8 + $0x78] sm:$0xff]
          %313 = vmatprep.subr.mxu0 0.0
          %314 = vmatpush1.msra.mxu0 %v297
          %315 = vmatprep.subr.mxu0 0.0
          %316 = vmatpush1.msra.mxu0 %v298
          %317 = vmatprep.subr.mxu0 0.0
          %318 = vmatpush1.msra.mxu0 %v299
          %319 = vmatprep.subr.mxu0 0.0
          %320 = vmatpush1.msra.mxu0 %v300
          %321 = vmatprep.subr.mxu0 0.0
          %322 = vmatpush1.msra.mxu0 %v301
          %323 = vmatprep.subr.mxu0 0.0
          %324 = vmatpush1.msra.mxu0 %v302
          %325 = vmatprep.subr.mxu0 0.0
          %326 = vmatpush1.msra.mxu0 %v303
          %327 = vmatprep.subr.mxu0 0.0
          %328 = vmatpush1.msra.mxu0 %v304
          %329 = vmatprep.subr.mxu0 0.0
          %330 = vmatpush1.msra.mxu0 %v305
          %331 = vmatprep.subr.mxu0 0.0
          %332 = vmatpush1.msra.mxu0 %v306
          %333 = vmatprep.subr.mxu0 0.0
          %334 = vmatpush1.msra.mxu0 %v307
          %335 = vmatprep.subr.mxu0 0.0
          %336 = vmatpush1.msra.mxu0 %v308
          %337 = vmatprep.subr.mxu0 0.0
          %338 = vmatpush1.msra.mxu0 %v309
          %339 = vmatprep.subr.mxu0 0.0
          %340 = vmatpush1.msra.mxu0 %v310
          %341 = vmatprep.subr.mxu0 0.0
          %342 = vmatpush1.msra.mxu0 %v311
          %343 = vmatprep.subr.mxu0 0.0
          %344 = vmatpush1.msra.mxu0 %v312
          %345 = vmatprep.subr.mxu0 0.0
          %346 = vmatpush1.msra.mxu0 0.0
          %347 = vmatprep.subr.mxu0 0.0
          %348 = vmatpush1.msra.mxu0 0.0
          %349 = vmatprep.subr.mxu0 0.0
          %350 = vmatpush1.msra.mxu0 0.0
          %351 = vmatprep.subr.mxu0 0.0
          %352 = vmatpush1.msra.mxu0 0.0
          %353 = vmatprep.subr.mxu0 0.0
          %354 = vmatpush1.msra.mxu0 0.0
          %355 = vmatprep.subr.mxu0 0.0
          %356 = vmatpush1.msra.mxu0 0.0
          %357 = vmatprep.subr.mxu0 0.0
          %358 = vmatpush1.msra.mxu0 0.0
          %359 = vmatprep.subr.mxu0 0.0
          %360 = vmatpush1.msra.mxu0 0.0
          %361 = vmatprep.subr.mxu0 0.0
          %362 = vmatpush1.msra.mxu0 0.0
          %363 = vmatprep.subr.mxu0 0.0
          %364 = vmatpush1.msra.mxu0 0.0
          %365 = vmatprep.subr.mxu0 0.0
          %366 = vmatpush1.msra.mxu0 0.0
          %367 = vmatprep.subr.mxu0 0.0
          %368 = vmatpush1.msra.mxu0 0.0
          %369 = vmatprep.subr.mxu0 0.0
          %370 = vmatpush1.msra.mxu0 0.0
          %371 = vmatprep.subr.mxu0 0.0
          %372 = vmatpush1.msra.mxu0 0.0
          %373 = vmatprep.subr.mxu0 0.0
          %374 = vmatpush1.msra.mxu0 0.0
          %375 = vmatprep.subr.mxu0 0.0
          %376 = vmatpush1.msra.mxu0 0.0
          %377 = vmatprep.mubr.f32.mxu0 0.0
          %378 = vmatmul.mubr.f32.gmra.mrb[0].mxu0 %v293
          %v379 = vpop.f32.mrb[0].mxu0
          %v380 = vadd.f32 0.0, %v379
          %v381 = vpop.f32.mrb[0].mxu0
          %382 = vmatprep.mubr.f32.mxu0 0.0
          %383 = vmatmul.mubr.f32.gmra.mrb[0].mxu0 %v294
          %v384 = vpop.f32.mrb[0].mxu0
          %v385 = vadd.f32 0.0, %v384
          %v386 = vpop.f32.mrb[0].mxu0
          %387 = vmatprep.mubr.f32.mxu0 0.0
          %388 = vmatmul.mubr.f32.gmra.mrb[0].mxu0 %v295
          %v389 = vpop.f32.mrb[0].mxu0
          %v390 = vadd.f32 0.0, %v389
          %v391 = vpop.f32.mrb[0].mxu0
          %392 = vmatprep.mubr.f32.mxu0 0.0
          %393 = vmatmul.mubr.f32.gmra.mrb[0].mxu0 %v296
          %v394 = vpop.f32.mrb[0].mxu0
          %v395 = vadd.f32 0.0, %v394
          %v396 = vpop.f32.mrb[0].mxu0
          %397 = vdwg.mxu0
          %v398 = vld [vmem:[#allocation6] sm:$0xff]
          %v399 = vld [vmem:[#allocation6 + $0x8] sm:$0xff]
          %v400 = vld [vmem:[#allocation6 + $0x10] sm:$0xff]
          %v401 = vld [vmem:[#allocation6 + $0x18] sm:$0xff]
          %v402 = vld [vmem:[%s4] sm:$0x1]
          %v404 = vlaneseq
          %v405 = vshrl.u32 %v404, 7
          %v406 = vsub.s32 0, %v405
          %v407 = vrot.slane %v402, %v406
          %vm409 = vcmask 261120
          %v411 = vsel %vm409, %v398, 0
          %v414 = vsel %vm409, %v399, 0
          %v417 = vsel %vm409, %v400, 0
          %v420 = vsel %vm409, %v401, 0
          %422 = vmatprep.subr.mxu0 0.0
          %423 = vmatpush1.msra.mxu0 %v380
          %424 = vmatprep.subr.mxu0 0.0
          %425 = vmatpush1.msra.mxu0 %v385
          %426 = vmatprep.subr.mxu0 0.0
          %427 = vmatpush1.msra.mxu0 %v390
          %428 = vmatprep.subr.mxu0 0.0
          %429 = vmatpush1.msra.mxu0 %v395
          %430 = vmatprep.subr.mxu0 0.0
          %431 = vmatpush1.msra.mxu0 0.0
          %432 = vmatprep.subr.mxu0 0.0
          %433 = vmatpush1.msra.mxu0 0.0
          %434 = vmatprep.subr.mxu0 0.0
          %435 = vmatpush1.msra.mxu0 0.0
          %436 = vmatprep.subr.mxu0 0.0
          %437 = vmatpush1.msra.mxu0 0.0
          %438 = vmatprep.subr.mxu0 0.0
          %439 = vmatpush1.msra.mxu0 0.0
          %440 = vmatprep.subr.mxu0 0.0
          %441 = vmatpush1.msra.mxu0 0.0
          %442 = vmatprep.subr.mxu0 0.0
          %443 = vmatpush1.msra.mxu0 0.0
          %444 = vmatprep.subr.mxu0 0.0
          %445 = vmatpush1.msra.mxu0 0.0
          %446 = vmatprep.subr.mxu0 0.0
          %447 = vmatpush1.msra.mxu0 0.0
          %448 = vmatprep.subr.mxu0 0.0
          %449 = vmatpush1.msra.mxu0 0.0
          %450 = vmatprep.subr.mxu0 0.0
          %451 = vmatpush1.msra.mxu0 0.0
          %452 = vmatprep.subr.mxu0 0.0
          %453 = vmatpush1.msra.mxu0 0.0
          %454 = vmatprep.subr.mxu0 0.0
          %455 = vmatpush1.msra.mxu0 0.0
          %456 = vmatprep.subr.mxu0 0.0
          %457 = vmatpush1.msra.mxu0 0.0
          %458 = vmatprep.subr.mxu0 0.0
          %459 = vmatpush1.msra.mxu0 0.0
          %460 = vmatprep.subr.mxu0 0.0
          %461 = vmatpush1.msra.mxu0 0.0
          %462 = vmatprep.subr.mxu0 0.0
          %463 = vmatpush1.msra.mxu0 0.0
          %464 = vmatprep.subr.mxu0 0.0
          %465 = vmatpush1.msra.mxu0 0.0
          %466 = vmatprep.subr.mxu0 0.0
          %467 = vmatpush1.msra.mxu0 0.0
          %468 = vmatprep.subr.mxu0 0.0
          %469 = vmatpush1.msra.mxu0 0.0
          %470 = vmatprep.subr.mxu0 0.0
          %471 = vmatpush1.msra.mxu0 0.0
          %472 = vmatprep.subr.mxu0 0.0
          %473 = vmatpush1.msra.mxu0 0.0
          %474 = vmatprep.subr.mxu0 0.0
          %475 = vmatpush1.msra.mxu0 0.0
          %476 = vmatprep.subr.mxu0 0.0
          %477 = vmatpush1.msra.mxu0 0.0
          %478 = vmatprep.subr.mxu0 0.0
          %479 = vmatpush1.msra.mxu0 0.0
          %480 = vmatprep.subr.mxu0 0.0
          %481 = vmatpush1.msra.mxu0 0.0
          %482 = vmatprep.subr.mxu0 0.0
          %483 = vmatpush1.msra.mxu0 0.0
          %484 = vmatprep.subr.mxu0 0.0
          %485 = vmatpush1.msra.mxu0 0.0
          %486 = vmatprep.mubr.f32.mxu0 0.0
          %487 = vmatmul.mubr.f32.gmra.mrb[0].mxu0 %v411
          %v488 = vpop.f32.mrb[0].mxu0
          %v489 = vadd.f32 %v407, %v488
          %v490 = vpop.f32.mrb[0].mxu0
          %491 = vmatprep.mubr.f32.mxu0 0.0
          %492 = vmatmul.mubr.f32.gmra.mrb[0].mxu0 %v414
          %v493 = vpop.f32.mrb[0].mxu0
          %v494 = vadd.f32 %v407, %v493
          %v495 = vpop.f32.mrb[0].mxu0
          %496 = vmatprep.mubr.f32.mxu0 0.0
          %497 = vmatmul.mubr.f32.gmra.mrb[0].mxu0 %v417
          %v498 = vpop.f32.mrb[0].mxu0
          %v499 = vadd.f32 %v407, %v498
          %v500 = vpop.f32.mrb[0].mxu0
          %501 = vmatprep.mubr.f32.mxu0 0.0
          %502 = vmatmul.mubr.f32.gmra.mrb[0].mxu0 %v420
          %v503 = vpop.f32.mrb[0].mxu0
          %v504 = vadd.f32 %v407, %v503
          %v505 = vpop.f32.mrb[0].mxu0
          %506 = vdwg.mxu0
          %v507 = vmax.f32 %v489, 0.0
          %v508 = vmax.f32 %v494, 0.0
          %v509 = vmax.f32 %v499, 0.0
          %v510 = vmax.f32 %v504, 0.0
          %511 = vst [vmem:[#allocation2] sm:$0xff] %v507
          %512 = vst [vmem:[#allocation2 + $0x8] sm:$0xff] %v508
          %513 = vst [vmem:[#allocation2 + $0x10] sm:$0xff] %v509
          %514 = vst [vmem:[#allocation2 + $0x18] sm:$0xff] %v510
        $region64: #{tpu_custom_call.1} parent=43 // pred_fallthru
          _
        %s515 = smul.u32 %s23, 8
        %s516 = scalar_lea.vmem [#allocation6], %s515
        %v517 = vld [vmem:[%s516] sm:$0xff]
        %v518 = vld [vmem:[#allocation2] sm:$0xff]
        %v519 = vld [vmem:[#allocation2 + $0x8] sm:$0xff]
        %v520 = vld [vmem:[#allocation2 + $0x10] sm:$0xff]
        %v521 = vld [vmem:[#allocation2 + $0x18] sm:$0xff]
        %vm522 = vcmask 261120
        %v524 = vsel %vm522, %v517, 0
        %526 = vmatprep.subr.mxu0 0.0
        %527 = vmatpush1.msra.mxu0 %v518
        %528 = vmatprep.subr.mxu0 0.0
        %529 = vmatpush1.msra.mxu0 %v519
        %530 = vmatprep.subr.mxu0 0.0
        %531 = vmatpush1.msra.mxu0 %v520
        %532 = vmatprep.subr.mxu0 0.0
        %533 = vmatpush1.msra.mxu0 %v521
        %534 = vmatprep.subr.mxu0 0.0
        %535 = vmatpush1.msra.mxu0 0.0
        %536 = vmatprep.subr.mxu0 0.0
        %537 = vmatpush1.msra.mxu0 0.0
        %538 = vmatprep.subr.mxu0 0.0
        %539 = vmatpush1.msra.mxu0 0.0
        %540 = vmatprep.subr.mxu0 0.0
        %541 = vmatpush1.msra.mxu0 0.0
        %542 = vmatprep.subr.mxu0 0.0
        %543 = vmatpush1.msra.mxu0 0.0
        %544 = vmatprep.subr.mxu0 0.0
        %545 = vmatpush1.msra.mxu0 0.0
        %546 = vmatprep.subr.mxu0 0.0
        %547 = vmatpush1.msra.mxu0 0.0
        %548 = vmatprep.subr.mxu0 0.0
        %549 = vmatpush1.msra.mxu0 0.0
        %550 = vmatprep.subr.mxu0 0.0
        %551 = vmatpush1.msra.mxu0 0.0
        %552 = vmatprep.subr.mxu0 0.0
        %553 = vmatpush1.msra.mxu0 0.0
        %554 = vmatprep.subr.mxu0 0.0
        %555 = vmatpush1.msra.mxu0 0.0
        %556 = vmatprep.subr.mxu0 0.0
        %557 = vmatpush1.msra.mxu0 0.0
        %558 = vmatprep.subr.mxu0 0.0
        %559 = vmatpush1.msra.mxu0 0.0
        %560 = vmatprep.subr.mxu0 0.0
        %561 = vmatpush1.msra.mxu0 0.0
        %562 = vmatprep.subr.mxu0 0.0
        %563 = vmatpush1.msra.mxu0 0.0
        %564 = vmatprep.subr.mxu0 0.0
        %565 = vmatpush1.msra.mxu0 0.0
        %566 = vmatprep.subr.mxu0 0.0
        %567 = vmatpush1.msra.mxu0 0.0
        %568 = vmatprep.subr.mxu0 0.0
        %569 = vmatpush1.msra.mxu0 0.0
        %570 = vmatprep.subr.mxu0 0.0
        %571 = vmatpush1.msra.mxu0 0.0
        %572 = vmatprep.subr.mxu0 0.0
        %573 = vmatpush1.msra.mxu0 0.0
        %574 = vmatprep.subr.mxu0 0.0
        %575 = vmatpush1.msra.mxu0 0.0
        %576 = vmatprep.subr.mxu0 0.0
        %577 = vmatpush1.msra.mxu0 0.0
        %578 = vmatprep.subr.mxu0 0.0
        %579 = vmatpush1.msra.mxu0 0.0
        %580 = vmatprep.subr.mxu0 0.0
        %581 = vmatpush1.msra.mxu0 0.0
        %582 = vmatprep.subr.mxu0 0.0
        %583 = vmatpush1.msra.mxu0 0.0
        %584 = vmatprep.subr.mxu0 0.0
        %585 = vmatpush1.msra.mxu0 0.0
        %586 = vmatprep.subr.mxu0 0.0
        %587 = vmatpush1.msra.mxu0 0.0
        %588 = vmatprep.subr.mxu0 0.0
        %589 = vmatpush1.msra.mxu0 0.0
        %590 = vmatprep.mubr.f32.mxu0 0.0
        %591 = vmatmul.mubr.f32.gmra.mrb[0].mxu0 %v524
        %v592 = vpop.f32.mrb[0].mxu0
        %v593 = vadd.f32 0.0, %v592
        %v594 = vpop.f32.mrb[0].mxu0
        %595 = vdwg.mxu0
        %v596 = vld [vmem:[#allocation9] sm:$0xff]
        %v597 = vld [vmem:[#allocation9 + $0x8] sm:$0xff]
        %v598 = vld [vmem:[#allocation9 + $0x10] sm:$0xff]
        %v599 = vld [vmem:[#allocation9 + $0x18] sm:$0xff]
        %v600 = vld [vmem:[#allocation9 + $0x20] sm:$0xff]
        %v601 = vld [vmem:[#allocation9 + $0x28] sm:$0xff]
        %v602 = vld [vmem:[#allocation9 + $0x30] sm:$0xff]
        %v603 = vld [vmem:[#allocation9 + $0x38] sm:$0xff]
        %v604 = vld [vmem:[#allocation9 + $0x40] sm:$0xff]
        %v605 = vld [vmem:[#allocation9 + $0x48] sm:$0xff]
        %v606 = vld [vmem:[#allocation9 + $0x50] sm:$0xff]
        %v607 = vld [vmem:[#allocation9 + $0x58] sm:$0xff]
        %v608 = vld [vmem:[#allocation9 + $0x60] sm:$0xff]
        %v609 = vld [vmem:[#allocation9 + $0x68] sm:$0xff]
        %v610 = vld [vmem:[#allocation9 + $0x70] sm:$0xff]
        %v611 = vld [vmem:[#allocation9 + $0x78] sm:$0xff]
        %v612 = vld [vmem:[#allocation9 + $0x80] sm:$0xff]
        %v613 = vld [vmem:[#allocation9 + $0x88] sm:$0xff]
        %v614 = vld [vmem:[#allocation9 + $0x90] sm:$0xff]
        %v615 = vld [vmem:[#allocation9 + $0x98] sm:$0xff]
        %v616 = vld [vmem:[#allocation9 + $0xa0] sm:$0xff]
        %v617 = vld [vmem:[#allocation9 + $0xa8] sm:$0xff]
        %v618 = vld [vmem:[#allocation9 + $0xb0] sm:$0xff]
        %v619 = vld [vmem:[#allocation9 + $0xb8] sm:$0xff]
        %v620 = vld [vmem:[#allocation9 + $0xc0] sm:$0xff]
        %v621 = vld [vmem:[#allocation9 + $0xc8] sm:$0xff]
        %v622 = vld [vmem:[#allocation9 + $0xd0] sm:$0xff]
        %v623 = vld [vmem:[#allocation9 + $0xd8] sm:$0xff]
        %v624 = vld [vmem:[#allocation9 + $0xe0] sm:$0xff]
        %v625 = vld [vmem:[#allocation9 + $0xe8] sm:$0xff]
        %v626 = vld [vmem:[#allocation9 + $0xf0] sm:$0xff]
        %v627 = vld [vmem:[#allocation9 + $0xf8] sm:$0xff]
        %v628 = vld [vmem:[%s5] sm:$0x3]
        %v630 = vlaneseq
        %v631 = vshrl.u32 %v630, 7
        %v632 = vsub.s32 0, %v631
        %v633 = vrot.slane %v628, %v632
        %v634 = vlaneseq
        %v635 = vshrl.u32 %v634, 7
        %v636 = vsub.s32 1, %v635
        %v637 = vrot.slane %v628, %v636
        %640 = vmatprep.subr.mxu0 %v597
        %641 = vmatpush1.msra.mxu0 %v596
        %642 = vmatprep.subr.mxu0 %v599
        %643 = vmatpush1.msra.mxu0 %v598
        %644 = vmatprep.subr.mxu0 %v601
        %645 = vmatpush1.msra.mxu0 %v600
        %646 = vmatprep.subr.mxu0 %v603
        %647 = vmatpush1.msra.mxu0 %v602
        %648 = vmatprep.subr.mxu0 %v605
        %649 = vmatpush1.msra.mxu0 %v604
        %650 = vmatprep.subr.mxu0 %v607
        %651 = vmatpush1.msra.mxu0 %v606
        %652 = vmatprep.subr.mxu0 %v609
        %653 = vmatpush1.msra.mxu0 %v608
        %654 = vmatprep.subr.mxu0 %v611
        %655 = vmatpush1.msra.mxu0 %v610
        %656 = vmatprep.subr.mxu0 %v613
        %657 = vmatpush1.msra.mxu0 %v612
        %658 = vmatprep.subr.mxu0 %v615
        %659 = vmatpush1.msra.mxu0 %v614
        %660 = vmatprep.subr.mxu0 %v617
        %661 = vmatpush1.msra.mxu0 %v616
        %662 = vmatprep.subr.mxu0 %v619
        %663 = vmatpush1.msra.mxu0 %v618
        %664 = vmatprep.subr.mxu0 %v621
        %665 = vmatpush1.msra.mxu0 %v620
        %666 = vmatprep.subr.mxu0 %v623
        %667 = vmatpush1.msra.mxu0 %v622
        %668 = vmatprep.subr.mxu0 %v625
        %669 = vmatpush1.msra.mxu0 %v624
        %670 = vmatprep.subr.mxu0 %v627
        %671 = vmatpush1.msra.mxu0 %v626
        %672 = vmatprep.subr.mxu0 0.0
        %673 = vmatpush1.msra.mxu0 0.0
        %674 = vmatprep.subr.mxu0 0.0
        %675 = vmatpush1.msra.mxu0 0.0
        %676 = vmatprep.subr.mxu0 0.0
        %677 = vmatpush1.msra.mxu0 0.0
        %678 = vmatprep.subr.mxu0 0.0
        %679 = vmatpush1.msra.mxu0 0.0
        %680 = vmatprep.subr.mxu0 0.0
        %681 = vmatpush1.msra.mxu0 0.0
        %682 = vmatprep.subr.mxu0 0.0
        %683 = vmatpush1.msra.mxu0 0.0
        %684 = vmatprep.subr.mxu0 0.0
        %685 = vmatpush1.msra.mxu0 0.0
        %686 = vmatprep.subr.mxu0 0.0
        %687 = vmatpush1.msra.mxu0 0.0
        %688 = vmatprep.subr.mxu0 0.0
        %689 = vmatpush1.msra.mxu0 0.0
        %690 = vmatprep.subr.mxu0 0.0
        %691 = vmatpush1.msra.mxu0 0.0
        %692 = vmatprep.subr.mxu0 0.0
        %693 = vmatpush1.msra.mxu0 0.0
        %694 = vmatprep.subr.mxu0 0.0
        %695 = vmatpush1.msra.mxu0 0.0
        %696 = vmatprep.subr.mxu0 0.0
        %697 = vmatpush1.msra.mxu0 0.0
        %698 = vmatprep.subr.mxu0 0.0
        %699 = vmatpush1.msra.mxu0 0.0
        %700 = vmatprep.subr.mxu0 0.0
        %701 = vmatpush1.msra.mxu0 0.0
        %702 = vmatprep.subr.mxu0 0.0
        %703 = vmatpush1.msra.mxu0 0.0
        %704 = vmatprep.mubr.f32.mxu0 0.0
        %705 = vmatmul.mubr.f32.gmra.mrb[0].mxu0 %v593
        %v706 = vpop.f32.mrb[0].mxu0
        %v707 = vadd.f32 %v633, %v706
        %v708 = vpop.f32.mrb[0].mxu0
        %v709 = vadd.f32 %v637, %v708
        %710 = vdwg.mxu0
        %711 = vst [vmem:[%s288] sm:$0xff] %v707
        %712 = vst [vmem:[%s288 + $0x8] sm:$0xff] %v709
        %s713 = sand.u32 %s157, 1
        %s714 = scalar_lea.sflag [#allocation5], %s713
        %s715 = sand.u32 %s157, 1
        %s716 = smul.addr %s715, 16
        %s717 = scalar_lea.vmem [#allocation11], %s716
        // Predicated region
        $region65: #{tpu_custom_call.1} parent=43 // pred_check
          %p718 = pneg %p167
        $region66: #{tpu_custom_call.1} parent=43 // pred_check_branch
          %720 = sbr.rel (%p718) target = $region68
        $region67: #{tpu_custom_call.1} parent=43 // pred_region
          %s722 = ssub.s32 256, 256
          %723 = vsyncadd %s714, %s722
          %s724 = smul.addr %s23, 2
          %s725 = smul.addr %s724, 128
          %s726 = scalar_lea.hbm %s6, %s725
          %s728 = sshll.u32 %s717, 4
          %s729 = int_to_ptr.vmem [resolvable:$true] %s728
          %731 = dma.vmem_to_hbm [thread:$0]  %s729, 256, %s726, %s714
        $region68: #{tpu_custom_call.1} parent=43 // pred_fallthru
          _
      $region44: #{tpu_custom_call.1} parent=5 // pred_fallthru
        _
      %p732 = scmp.le.s32.totalorder 2, %s18
      // Predicated region
      $region69: #{tpu_custom_call.1} parent=5 // pred_check
        %p733 = pneg %p732
      $region70: #{tpu_custom_call.1} parent=5 // pred_check_branch
        %735 = sbr.rel (%p733) target = $region72
      $region71: #{tpu_custom_call.1} parent=5 // pred_region
        %s736 = ssub.s32 %s18, 2
        // Predicated region
        $region73: #{tpu_custom_call.1} parent=71 // pred_check
          %p737 = pneg %p173
        $region74: #{tpu_custom_call.1} parent=71 // pred_check_branch
          %739 = sbr.rel (%p737) target = $region76
        $region75: #{tpu_custom_call.1} parent=71 // pred_region
          %s740 = sand.u32 %s158, 1
          %s741 = scalar_lea.sflag [#allocation5], %s740
          %s742 = sand.u32 %s158, 1
          %s743 = smul.addr %s742, 16
          %s744 = scalar_lea.vmem [#allocation11], %s743
          %745 = dma.done %s741, 256
        $region76: #{tpu_custom_call.1} parent=71 // pred_fallthru
          _
      $region72: #{tpu_custom_call.1} parent=5 // pred_fallthru
        _
    $region6: #{tpu_custom_call.1} parent=1 // loop_footer
      %s22 = sadd.s32 1, %s18
    $region7: #{tpu_custom_call.1} parent=1 // loop_footer_branch
      %17 = sbr.rel target = $region3
    $region8: #{tpu_custom_call.1} parent=1 // loop_exit
      _
    %746 = vsyncpa [#allocation4], 1
    %s747 = scalar_lea.sflag [#allocation4], 1
    %748 = vsyncpa %s747, 1
    %749 = vsyncpa [#allocation7], 1
    %750 = vsyncpa [#allocation10], 1
    %751 = vsyncpa [#allocation5], 1
    %s752 = scalar_lea.sflag [#allocation5], 1
    %753 = vsyncpa %s752, 1

</llo_original>
